<compile_context>
chip_gen: v7x
topology: tpu7x:2x2x1
jax: 0.10.0
libtpu: 0.0.40
codegen_flags: <defaults>
</compile_context>

<pallas_src>
import jax
import jax.numpy as jnp
from jax import lax
from jax.experimental import pallas as pl
from jax.experimental.pallas import tpu as pltpu


def gesture_kernel(x_ref, wc_ref, w1_ref, b1_ref, w2_ref, b2_ref, out_ref):
    # x_ref  : VMEM (40, TB) bf16   activations, batch-in-lanes (pipelined)
    # wc_ref : VMEM (160, 40) bf16  analytic conv+pool candidate matrix (resident)
    # w1_ref : VMEM (64, 40) bf16   fc1 weight (resident)
    # b1_ref : VMEM (64, 1)  f32    fc1 bias with conv bias folded in
    # w2_ref : VMEM (4, 64)  bf16   fc2 weight
    # b2_ref : VMEM (4, 1)   f32    fc2 bias
    # out_ref: VMEM (4, TB)  f32    softmax probabilities (lane-dense store)

    # Conv2d(1->1, 2x2, pad=1) on each 1x8 row-slice followed by
    # MaxPool2d(2, stride=1): the four conv values feeding each pooled column
    # are linear in x, so one MXU dot yields all candidates stacked on the
    # sublane axis: rows [0:40]=top[c], [40:80]=bot[c], [80:120]=top[c+1],
    # [120:160]=bot[c+1].  (Conv bias commutes with the max and is folded
    # into the fc1 bias in the wrapper.)
    conv4 = jnp.dot(wc_ref[...], x_ref[...],
                    preferred_element_type=jnp.float32)          # (160, TB) f32
    pool = jnp.maximum(jnp.maximum(conv4[0:40], conv4[40:80]),
                       jnp.maximum(conv4[80:120], conv4[120:160]))  # (40, TB)

    # fc1: (64,40)@(40,TB) on the MXU, then ReLU.
    h = jnp.dot(w1_ref[...], pool.astype(jnp.bfloat16),
                preferred_element_type=jnp.float32) + b1_ref[...]
    h = jnp.maximum(h, 0.0)
    # TODO(synk): nn.Dropout(0.7) is stochastic in train mode; eval-mode identity here.

    # fc2: (4,64)@(64,TB).
    logits = jnp.dot(w2_ref[...], h.astype(jnp.bfloat16),
                     preferred_element_type=jnp.float32) + b2_ref[...]   # (4, TB)

    # Numerically-stable softmax over the 4 classes (sublane axis); the
    # normalization uses the EUP approximate reciprocal + one Newton step.
    m = jnp.max(logits, axis=0, keepdims=True)
    e = jnp.exp(logits - m)
    denom = jnp.sum(e, axis=0, keepdims=True)
    r = pl.reciprocal(denom, approx=True)
    r = r * (2.0 - denom * r)
    out_ref[...] = e * r


def _round_up(n, m):
    return ((n + m - 1) // m) * m


def gesture_forward(x_nchw, params, *, block_b=8192):
    """x_nchw: (B, 1, 5, 8) float32; returns (B, 4) softmax probabilities."""
    conv_w, conv_b, w1, b1, w2, b2 = params
    B = x_nchw.shape[0]

    # Batch-in-lanes activation matrix: flatten (free view of contiguous NCHW)
    # then transpose so the batch sits on the 128-wide lane axis; bf16 keeps
    # the kernel's activation DMA full-line and halves its VMEM footprint.
    x_t = x_nchw.reshape(B, 40).T.astype(jnp.bfloat16)            # (40, B)

    # Batch tile: lane axis must be a multiple of 128.  8192 amortizes the
    # ~0.35us per-grid-step overhead; peak VMEM stays ~12 MiB on every
    # generation (explicit vmem_limit below).
    tb = min(block_b, _round_up(B, 128))
    bp = _round_up(B, tb)
    if bp != B:
        # Padded columns compute well-defined zero-input outputs; they are
        # sliced off in the wrapper return (pure wasted work on the last tile).
        x_t = jnp.pad(x_t, ((0, 0), (0, bp - B)))

    # Analytic conv+pool candidate matrix (built once; grid-invariant).
    w00 = conv_w[0, 0, 0, 0]
    w01 = conv_w[0, 0, 0, 1]
    w10 = conv_w[0, 0, 1, 0]
    w11 = conv_w[0, 0, 1, 1]
    f = jnp.arange(40)
    eye = jnp.eye(40, dtype=jnp.float32)
    left = jnp.eye(40, k=-1, dtype=jnp.float32) * (f % 8 != 0)[:, None].astype(jnp.float32)
    right = jnp.eye(40, k=1, dtype=jnp.float32) * (f % 8 != 7)[:, None].astype(jnp.float32)
    wc = jnp.concatenate(
        [w10 * left + w11 * eye,      # top[c]   = w10*x[c-1] + w11*x[c]
         w00 * left + w01 * eye,      # bot[c]   = w00*x[c-1] + w01*x[c]
         w10 * eye + w11 * right,     # top[c+1] = w10*x[c]   + w11*x[c+1]
         w00 * eye + w01 * right],    # bot[c+1] = w00*x[c]   + w01*x[c+1]
        axis=0).astype(jnp.bfloat16)                               # (160, 40)

    w1_bf = w1.astype(jnp.bfloat16)                                # (64, 40)
    # Conv bias is constant across the pooled features, so
    # fc1(pool + cb) = fc1(pool) + cb * (W1 @ 1): fold it into the fc1 bias.
    b1_eff = (b1.astype(jnp.float32)
              + conv_b[0] * jnp.sum(w1_bf.astype(jnp.float32), axis=1)
              ).reshape(64, 1)
    w2_bf = w2.astype(jnp.bfloat16)                                # (4, 64)
    b2_col = b2.astype(jnp.float32).reshape(4, 1)

    out = pl.pallas_call(
        gesture_kernel,
        out_shape=jax.ShapeDtypeStruct((4, bp), jnp.float32),
        grid=(bp // tb,),
        in_specs=[
            pl.BlockSpec((40, tb), lambda i: (0, i)),     # x^T: pipelined over batch lanes
            pl.BlockSpec((160, 40), lambda i: (0, 0)),    # conv+pool candidates (resident)
            pl.BlockSpec((64, 40), lambda i: (0, 0)),     # fc1 W (resident)
            pl.BlockSpec((64, 1), lambda i: (0, 0)),      # fc1 bias (+ folded conv bias)
            pl.BlockSpec((4, 64), lambda i: (0, 0)),      # fc2 W (resident)
            pl.BlockSpec((4, 1), lambda i: (0, 0)),       # fc2 bias
        ],
        out_specs=pl.BlockSpec((4, tb), lambda i: (0, i)),
        compiler_params=pltpu.CompilerParams(
            dimension_semantics=("parallel",),            # shard batch over 2 TCs on v7x
            vmem_limit_bytes=32 * 1024 * 1024,            # explicit (v5e default is 16 MiB)
        ),
    )(x_t, wc, w1_bf, b1_eff, w2_bf, b2_col)
    return out[:, :B].T                                   # (B, 4)


def ref_forward(x_nchw, params):
    """Pure-JAX f32 reference mirroring the PyTorch forward (eval mode)."""
    conv_w, conv_b, w1, b1, w2, b2 = params
    B = x_nchw.shape[0]
    slices = []
    for i in range(5):
        s = x_nchw[:, :, i, :][:, :, None, :]                     # (B,1,1,8)
        conv = lax.conv_general_dilated(
            s, conv_w, window_strides=(1, 1), padding=((1, 1), (1, 1)),
            dimension_numbers=("NCHW", "OIHW", "NCHW")) + conv_b.reshape(1, 1, 1, 1)
        pool = lax.reduce_window(conv, -jnp.inf, lax.max,
                                 (1, 1, 2, 2), (1, 1, 1, 1), "VALID")
        slices.append(pool)
    xc = jnp.concatenate(slices, axis=1)                          # (B,5,1,8)
    feat = xc.reshape(B, -1)                                      # (B,40)
    h = jax.nn.relu(feat @ w1.T + b1)
    logits = h @ w2.T + b2
    return jax.nn.softmax(logits, axis=1)


if __name__ == "__main__":
    key = jax.random.PRNGKey(0)
    ks = jax.random.split(key, 7)
    # Deterministic synthetic parameters (shapes from GestureClassifier.__init__).
    conv_w = jax.random.normal(ks[0], (1, 1, 2, 2), jnp.float32) * 0.5
    conv_b = jax.random.normal(ks[1], (1,), jnp.float32) * 0.1
    w1 = jax.random.normal(ks[2], (64, 40), jnp.float32) * (1.0 / jnp.sqrt(40.0))
    b1 = jax.random.normal(ks[3], (64,), jnp.float32) * 0.1
    w2 = jax.random.normal(ks[4], (4, 64), jnp.float32) * (1.0 / jnp.sqrt(64.0))
    b2 = jax.random.normal(ks[5], (4,), jnp.float32) * 0.1
    params = (conv_w, conv_b, w1, b1, w2, b2)

    # Input implied by the forward: 5 row-slices of 8 -> (B, 1, 5, 8).
    x = jax.random.normal(ks[6], (2, 1, 5, 8), jnp.float32)
    out = jax.block_until_ready(gesture_forward(x, params))
    ref = jax.block_until_ready(ref_forward(x, params))
    assert out.shape == (2, 4)
    # Compared against the TRUE f32 reference: deviation is bounded by the
    # bf16 quantization of activations / MXU operands (typically ~1e-3 abs).
    assert jnp.allclose(out, ref, atol=1e-2), (out, ref)
    assert jnp.allclose(jnp.sum(out, axis=1), 1.0, atol=1e-3)

    # Exercise the multi-step pipelined grid + batch-remainder (padding) path.
    xb = jax.random.normal(jax.random.PRNGKey(1), (300, 1, 5, 8), jnp.float32)
    outb = jax.block_until_ready(gesture_forward(xb, params, block_b=128))
    refb = jax.block_until_ready(ref_forward(xb, params))
    assert outb.shape == (300, 4)
    assert jnp.allclose(outb, refb, atol=1e-2)
    assert jnp.allclose(jnp.sum(outb, axis=1), 1.0, atol=1e-3)

    print("KERNEL_OK")
</pallas_src>

<mosaic_0001>
module attributes {stable_mosaic.version = 11 : i64} {
  func.func @gesture_kernel(%arg0: i32, %arg1: memref<40x128xbf16, #tpu.memory_space<vmem>>, %arg2: memref<160x40xbf16, #tpu.memory_space<vmem>>, %arg3: memref<64x40xbf16, #tpu.memory_space<vmem>>, %arg4: memref<64x1xf32, #tpu.memory_space<vmem>>, %arg5: memref<4x64xbf16, #tpu.memory_space<vmem>>, %arg6: memref<4x1xf32, #tpu.memory_space<vmem>>, %arg7: memref<4x128xf32, #tpu.memory_space<vmem>>) attributes {dimension_semantics = [#tpu.dimension_semantics<parallel>], iteration_bounds = array<i64: 1>, scalar_prefetch = 0 : i64, scratch_operands = 0 : i64, tpu.core_type = #tpu.core_type<tc>, window_params = [{transform_indices = @transform_0, window_bounds = array<i64: 40, 128>}, {pipeline_mode = #tpu.pipeline_mode<synchronous>, transform_indices = @transform_1, window_bounds = array<i64: 160, 40>}, {pipeline_mode = #tpu.pipeline_mode<synchronous>, transform_indices = @transform_2, window_bounds = array<i64: 64, 40>}, {pipeline_mode = #tpu.pipeline_mode<synchronous>, transform_indices = @transform_3, window_bounds = array<i64: 64, 1>}, {pipeline_mode = #tpu.pipeline_mode<synchronous>, transform_indices = @transform_4, window_bounds = array<i64: 4, 64>}, {pipeline_mode = #tpu.pipeline_mode<synchronous>, transform_indices = @transform_5, window_bounds = array<i64: 4, 1>}, {transform_indices = @transform_6, window_bounds = array<i64: 4, 128>}]} {
    %c0 = arith.constant 0 : index
    %c0_0 = arith.constant 0 : index
    %0 = vector.load %arg2[%c0, %c0_0] : memref<160x40xbf16, #tpu.memory_space<vmem>>, vector<160x40xbf16>
    %c0_1 = arith.constant 0 : index
    %c0_2 = arith.constant 0 : index
    %1 = vector.load %arg1[%c0_1, %c0_2] : memref<40x128xbf16, #tpu.memory_space<vmem>>, vector<40x128xbf16>
    %cst = arith.constant dense<0.000000e+00> : vector<160x128xf32>
    %2 = tpu.matmul %0, %1, %cst {dimension_numbers = #tpu.dot_dimension_numbers<[1], [0], [0], [1], [0, 0, 1, 1], [], []>} : vector<160x40xbf16>, vector<40x128xbf16>, vector<160x128xf32> -> vector<160x128xf32>
    %3 = vector.extract_strided_slice %2 {offsets = [0, 0], sizes = [40, 128], strides = [1, 1]} : vector<160x128xf32> to vector<40x128xf32>
    %4 = vector.extract_strided_slice %2 {offsets = [40, 0], sizes = [40, 128], strides = [1, 1]} : vector<160x128xf32> to vector<40x128xf32>
    %5 = arith.maximumf %3, %4 : vector<40x128xf32>
    %6 = vector.extract_strided_slice %2 {offsets = [80, 0], sizes = [40, 128], strides = [1, 1]} : vector<160x128xf32> to vector<40x128xf32>
    %7 = vector.extract_strided_slice %2 {offsets = [120, 0], sizes = [40, 128], strides = [1, 1]} : vector<160x128xf32> to vector<40x128xf32>
    %8 = arith.maximumf %6, %7 : vector<40x128xf32>
    %9 = arith.maximumf %5, %8 : vector<40x128xf32>
    %c0_3 = arith.constant 0 : index
    %c0_4 = arith.constant 0 : index
    %10 = vector.load %arg3[%c0_3, %c0_4] : memref<64x40xbf16, #tpu.memory_space<vmem>>, vector<64x40xbf16>
    %11 = arith.truncf %9 : vector<40x128xf32> to vector<40x128xbf16>
    %cst_5 = arith.constant dense<0.000000e+00> : vector<64x128xf32>
    %12 = tpu.matmul %10, %11, %cst_5 {dimension_numbers = #tpu.dot_dimension_numbers<[1], [0], [0], [1], [0, 0, 1, 1], [], []>} : vector<64x40xbf16>, vector<40x128xbf16>, vector<64x128xf32> -> vector<64x128xf32>
    %c0_6 = arith.constant 0 : index
    %c0_7 = arith.constant 0 : index
    %13 = vector.load %arg4[%c0_6, %c0_7] : memref<64x1xf32, #tpu.memory_space<vmem>>, vector<64x1xf32>
    %14 = vector.broadcast %13 : vector<64x1xf32> to vector<64x128xf32>
    %15 = arith.addf %12, %14 : vector<64x128xf32>
    %cst_8 = arith.constant 0.000000e+00 : f32
    %16 = vector.broadcast %cst_8 : f32 to vector<64x128xf32>
    %17 = arith.maximumf %15, %16 : vector<64x128xf32>
    %c0_9 = arith.constant 0 : index
    %c0_10 = arith.constant 0 : index
    %18 = vector.load %arg5[%c0_9, %c0_10] : memref<4x64xbf16, #tpu.memory_space<vmem>>, vector<4x64xbf16>
    %19 = arith.truncf %17 : vector<64x128xf32> to vector<64x128xbf16>
    %cst_11 = arith.constant dense<0.000000e+00> : vector<4x128xf32>
    %20 = tpu.matmul %18, %19, %cst_11 {dimension_numbers = #tpu.dot_dimension_numbers<[1], [0], [0], [1], [0, 0, 1, 1], [], []>} : vector<4x64xbf16>, vector<64x128xbf16>, vector<4x128xf32> -> vector<4x128xf32>
    %c0_12 = arith.constant 0 : index
    %c0_13 = arith.constant 0 : index
    %21 = vector.load %arg6[%c0_12, %c0_13] : memref<4x1xf32, #tpu.memory_space<vmem>>, vector<4x1xf32>
    %22 = vector.broadcast %21 : vector<4x1xf32> to vector<4x128xf32>
    %23 = arith.addf %20, %22 : vector<4x128xf32>
    %cst_14 = arith.constant dense<0xFF800000> : vector<128xf32>
    %24 = vector.multi_reduction <maximumf>, %23, %cst_14 [0] : vector<4x128xf32> to vector<128xf32>
    %25 = vector.shape_cast %24 : vector<128xf32> to vector<1x128xf32>
    %26 = vector.broadcast %25 : vector<1x128xf32> to vector<4x128xf32>
    %27 = arith.subf %23, %26 : vector<4x128xf32>
    %28 = math.exp %27 : vector<4x128xf32>
    %cst_15 = arith.constant dense<0.000000e+00> : vector<128xf32>
    %29 = vector.multi_reduction <add>, %28, %cst_15 [0] : vector<4x128xf32> to vector<128xf32>
    %30 = vector.shape_cast %29 : vector<128xf32> to vector<1x128xf32>
    %31 = tpu.reciprocal %30 {approx = true} : vector<1x128xf32> -> vector<1x128xf32>
    %32 = arith.mulf %30, %31 : vector<1x128xf32>
    %cst_16 = arith.constant 2.000000e+00 : f32
    %33 = vector.broadcast %cst_16 : f32 to vector<1x128xf32>
    %34 = arith.subf %33, %32 : vector<1x128xf32>
    %35 = arith.mulf %31, %34 : vector<1x128xf32>
    %36 = vector.broadcast %35 : vector<1x128xf32> to vector<4x128xf32>
    %37 = arith.mulf %28, %36 : vector<4x128xf32>
    %c0_17 = arith.constant 0 : index
    %c0_18 = arith.constant 0 : index
    %38 = vector.load %arg7[%c0_17, %c0_18] : memref<4x128xf32, #tpu.memory_space<vmem>>, vector<4x128xf32>
    tpu.vector_store %arg7[%c0_17, %c0_18], %37 {strides = array<i32>} : memref<4x128xf32, #tpu.memory_space<vmem>>, vector<4x128xf32>,
    return
  }
  func.func @transform_0(%arg0: i32) -> (i32, i32) {
    %c0_i32 = arith.constant 0 : i32
    %c0_i32_0 = arith.constant 0 : i32
    return %c0_i32, %arg0 : i32, i32
  }
  func.func @transform_1(%arg0: i32) -> (i32, i32) {
    %c0_i32 = arith.constant 0 : i32
    %c0_i32_0 = arith.constant 0 : i32
    %c0_i32_1 = arith.constant 0 : i32
    return %c0_i32, %c0_i32_0 : i32, i32
  }
  func.func @transform_2(%arg0: i32) -> (i32, i32) {
    %c0_i32 = arith.constant 0 : i32
    %c0_i32_0 = arith.constant 0 : i32
    %c0_i32_1 = arith.constant 0 : i32
    return %c0_i32, %c0_i32_0 : i32, i32
  }
  func.func @transform_3(%arg0: i32) -> (i32, i32) {
    %c0_i32 = arith.constant 0 : i32
    %c0_i32_0 = arith.constant 0 : i32
    %c0_i32_1 = arith.constant 0 : i32
    return %c0_i32, %c0_i32_0 : i32, i32
  }
  func.func @transform_4(%arg0: i32) -> (i32, i32) {
    %c0_i32 = arith.constant 0 : i32
    %c0_i32_0 = arith.constant 0 : i32
    %c0_i32_1 = arith.constant 0 : i32
    return %c0_i32, %c0_i32_0 : i32, i32
  }
  func.func @transform_5(%arg0: i32) -> (i32, i32) {
    %c0_i32 = arith.constant 0 : i32
    %c0_i32_0 = arith.constant 0 : i32
    %c0_i32_1 = arith.constant 0 : i32
    return %c0_i32, %c0_i32_0 : i32, i32
  }
  func.func @transform_6(%arg0: i32) -> (i32, i32) {
    %c0_i32 = arith.constant 0 : i32
    %c0_i32_0 = arith.constant 0 : i32
    return %c0_i32, %arg0 : i32, i32
  }
}

</mosaic_0001>

<llo_original>
// kernel: tpu_custom_call.1
$region0: #{tpu_custom_call.1}
  #allocation0 [shape = 'u32[]', space=smem, size = 0x4, offset = 0x4, fixed_abs, tag = 'smem constant byte address 0x4 - core index']
  #allocation1 [shape = 'u32[144,128]{1,0:T(1,128)}', space=vmem, size = 0x12000, scoped, tag = 'internal scratch']
  %s0 = inlined_call_operand.vmem [shape: bf16[40,128], index: 0, kind: input, shape index: {}]
  %s1 = inlined_call_operand.vmem [shape: bf16[160,40], index: 1, kind: input, shape index: {}]
  %s2 = inlined_call_operand.vmem [shape: bf16[64,40], index: 2, kind: input, shape index: {}]
  %s3 = inlined_call_operand.vmem [shape: f32[64,1], index: 3, kind: input, shape index: {}]
  %s4 = inlined_call_operand.vmem [shape: bf16[4,64], index: 4, kind: input, shape index: {}]
  %s5 = inlined_call_operand.vmem [shape: f32[4,1], index: 5, kind: input, shape index: {}]
  %s6 = inlined_call_operand.hbm [shape: f32[4,128], index: 6, kind: output, shape index: {}]
  %s7 = sld [smem:[#allocation0]]
  $region34: #{tpu_custom_call.1} parent=0
    _
  %s9 = ssub.s32 1, %s7
  %s10 = scalar_select 0, %s9, %s7
  $region1: #{tpu_custom_call.1} parent=0
    #allocation2 [shape = 'u8[2048]{0}', space=vmem, size = 0x800, scoped, tag = 'output window, operand 0, single buffered']
    #allocation3 [shape = 's32[1]{0}', space=sflag, size = 0x4, scoped, tag = 'scoped memory for tpu_custom_call.1']
    %11 = vsyncpa [#allocation3], 0
    // Predicated region
    $region2: #{tpu_custom_call.1} parent=1 // pred_check
      _
    $region3: #{tpu_custom_call.1} parent=1 // pred_check_branch
      %13 = sbr.rel (0) target = $region5
    $region4: #{tpu_custom_call.1} parent=1 // pred_region
      _
    $region5: #{tpu_custom_call.1} parent=1 // pred_fallthru
      _
    // Predicated region
    $region6: #{tpu_custom_call.1} parent=1 // pred_check
      _
    $region7: #{tpu_custom_call.1} parent=1 // pred_check_branch
      %15 = sbr.rel (0) target = $region9
    $region8: #{tpu_custom_call.1} parent=1 // pred_region
      _
    $region9: #{tpu_custom_call.1} parent=1 // pred_fallthru
      _
    // Predicated region
    $region10: #{tpu_custom_call.1} parent=1 // pred_check
      _
    $region11: #{tpu_custom_call.1} parent=1 // pred_check_branch
      %17 = sbr.rel (0) target = $region13
    $region12: #{tpu_custom_call.1} parent=1 // pred_region
      _
    $region13: #{tpu_custom_call.1} parent=1 // pred_fallthru
      _
    // Predicated region
    $region14: #{tpu_custom_call.1} parent=1 // pred_check
      _
    $region15: #{tpu_custom_call.1} parent=1 // pred_check_branch
      %19 = sbr.rel (0) target = $region17
    $region16: #{tpu_custom_call.1} parent=1 // pred_region
      _
    $region17: #{tpu_custom_call.1} parent=1 // pred_fallthru
      _
    // Predicated region
    $region18: #{tpu_custom_call.1} parent=1 // pred_check
      _
    $region19: #{tpu_custom_call.1} parent=1 // pred_check_branch
      %21 = sbr.rel (0) target = $region21
    $region20: #{tpu_custom_call.1} parent=1 // pred_region
      _
    $region21: #{tpu_custom_call.1} parent=1 // pred_fallthru
      _
    // Predicated region
    $region22: #{tpu_custom_call.1} parent=1 // pred_check
      _
    $region23: #{tpu_custom_call.1} parent=1 // pred_check_branch
      %23 = sbr.rel (0) target = $region25
    $region24: #{tpu_custom_call.1} parent=1 // pred_region
      _
    $region25: #{tpu_custom_call.1} parent=1 // pred_fallthru
      _
    %v25 = vld [vmem:[%s1] sm:$0xf]
    %v26 = vld [vmem:[%s1 + $0x4] sm:$0xf]
    %v27 = vld [vmem:[%s1 + $0x8] sm:$0xf]
    %v28 = vld [vmem:[%s1 + $0xc] sm:$0xf]
    %v29 = vld [vmem:[%s1 + $0x10] sm:$0xf]
    %v30 = vld [vmem:[%s1 + $0x14] sm:$0xf]
    %v31 = vld [vmem:[%s1 + $0x18] sm:$0xf]
    %v32 = vld [vmem:[%s1 + $0x1c] sm:$0xf]
    %v33 = vld [vmem:[%s1 + $0x20] sm:$0xf]
    %v34 = vld [vmem:[%s1 + $0x24] sm:$0xf]
    %v35 = vld [vmem:[%s1 + $0x28] sm:$0xf]
    %v36 = vld [vmem:[%s1 + $0x2c] sm:$0xf]
    %v37 = vld [vmem:[%s1 + $0x30] sm:$0xf]
    %v38 = vld [vmem:[%s1 + $0x34] sm:$0xf]
    %v39 = vld [vmem:[%s1 + $0x38] sm:$0xf]
    %v40 = vld [vmem:[%s1 + $0x3c] sm:$0xf]
    %v41 = vld [vmem:[%s1 + $0x40] sm:$0xf]
    %v42 = vld [vmem:[%s1 + $0x44] sm:$0xf]
    %v43 = vld [vmem:[%s1 + $0x48] sm:$0xf]
    %v44 = vld [vmem:[%s1 + $0x4c] sm:$0xf]
    %v45 = vld [vmem:[%s0] sm:$0xf]
    %v46 = vld [vmem:[%s0 + $0x4] sm:$0xf]
    %v47 = vld [vmem:[%s0 + $0x8] sm:$0xf]
    %v48 = vld [vmem:[%s0 + $0xc] sm:$0xf]
    %v49 = vld [vmem:[%s0 + $0x10] sm:$0xf]
    %v70 = vunpack.c.l.b16 %v25
    %v71 = vunpack.c.l.b16 %v26
    %v72 = vunpack.c.l.b16 %v27
    %v73 = vunpack.c.l.b16 %v28
    %v74 = vunpack.c.l.b16 %v29
    %v75 = vunpack.c.l.b16 %v30
    %v76 = vunpack.c.l.b16 %v31
    %v77 = vunpack.c.l.b16 %v32
    %v78 = vunpack.c.l.b16 %v33
    %v79 = vunpack.c.l.b16 %v34
    %v80 = vunpack.c.l.b16 %v35
    %v81 = vunpack.c.l.b16 %v36
    %v82 = vunpack.c.l.b16 %v37
    %v83 = vunpack.c.l.b16 %v38
    %v84 = vunpack.c.l.b16 %v39
    %v85 = vunpack.c.l.b16 %v40
    %v86 = vunpack.c.l.b16 %v41
    %v87 = vunpack.c.l.b16 %v42
    %v88 = vunpack.c.l.b16 %v43
    %v89 = vunpack.c.l.b16 %v44
    %v90 = vpack.c.b16 %v71, %v70
    %v91 = vpack.c.b16 %v73, %v72
    %v92 = vpack.c.b16 %v75, %v74
    %v93 = vpack.c.b16 %v77, %v76
    %v94 = vpack.c.b16 %v79, %v78
    %v95 = vpack.c.b16 %v81, %v80
    %v96 = vpack.c.b16 %v83, %v82
    %v97 = vpack.c.b16 %v85, %v84
    %v98 = vpack.c.b16 %v87, %v86
    %v99 = vpack.c.b16 %v89, %v88
    %v105 = vunpack.c.l.b16 %v45
    %v106 = vunpack.c.l.b16 %v46
    %v107 = vunpack.c.l.b16 %v47
    %v108 = vunpack.c.l.b16 %v48
    %v109 = vunpack.c.l.b16 %v49
    %v110 = vpack.c.b16 %v106, %v105
    %v111 = vpack.c.b16 %v108, %v107
    %v112 = vpack.c.b16 %v109, %v109
    %vm115 = vcmask 326656
    %v117 = vsel %vm115, %v90, 0
    %v120 = vsel %vm115, %v91, 0
    %v123 = vsel %vm115, %v92, 0
    %v126 = vsel %vm115, %v93, 0
    %v129 = vsel %vm115, %v94, 0
    %v132 = vsel %vm115, %v95, 0
    %v135 = vsel %vm115, %v96, 0
    %v138 = vsel %vm115, %v97, 0
    %v141 = vsel %vm115, %v98, 0
    %v144 = vsel %vm115, %v99, 0
    %vm146 = vcmask 1043456
    %v148 = vsel %vm146, %v112, 0
    %150 = vmatprep.subr.bf16.mxu0 0
    %151 = vmatpush1.bf16.msra.mxu0 %v110
    %152 = vmatprep.subr.bf16.mxu0 0
    %153 = vmatpush1.bf16.msra.mxu0 %v111
    %154 = vmatprep.subr.bf16.mxu0 0
    %155 = vmatpush1.bf16.msra.mxu0 %v148
    %156 = vmatprep.subr.bf16.mxu0 0
    %157 = vmatpush1.bf16.msra.mxu0 0
    %158 = vmatprep.subr.bf16.mxu0 0
    %159 = vmatpush1.bf16.msra.mxu0 0
    %160 = vmatprep.subr.bf16.mxu0 0
    %161 = vmatpush1.bf16.msra.mxu0 0
    %162 = vmatprep.subr.bf16.mxu0 0
    %163 = vmatpush1.bf16.msra.mxu0 0
    %164 = vmatprep.subr.bf16.mxu0 0
    %165 = vmatpush1.bf16.msra.mxu0 0
    %166 = vmatprep.subr.bf16.mxu0 0
    %167 = vmatpush1.bf16.msra.mxu0 0
    %168 = vmatprep.subr.bf16.mxu0 0
    %169 = vmatpush1.bf16.msra.mxu0 0
    %170 = vmatprep.subr.bf16.mxu0 0
    %171 = vmatpush1.bf16.msra.mxu0 0
    %172 = vmatprep.subr.bf16.mxu0 0
    %173 = vmatpush1.bf16.msra.mxu0 0
    %174 = vmatprep.subr.bf16.mxu0 0
    %175 = vmatpush1.bf16.msra.mxu0 0
    %176 = vmatprep.subr.bf16.mxu0 0
    %177 = vmatpush1.bf16.msra.mxu0 0
    %178 = vmatprep.subr.bf16.mxu0 0
    %179 = vmatpush1.bf16.msra.mxu0 0
    %180 = vmatprep.subr.bf16.mxu0 0
    %181 = vmatpush1.bf16.msra.mxu0 0
    %182 = vmatprep.mubr.bf16.mxu0 0
    %183 = vmatmul.mubr.bf16.gmra.mrb[0].mxu0 %v117
    %v184 = vpop.f32.mrb[0].mxu0
    %v185 = vadd.f32 0.0, %v184
    %v186 = vpop.f32.mrb[0].mxu0
    %v187 = vpop.f32.mrb[0].mxu0
    %v188 = vadd.f32 0.0, %v187
    %v189 = vpop.f32.mrb[0].mxu0
    %190 = vmatprep.mubr.bf16.mxu0 0
    %191 = vmatmul.mubr.bf16.gmra.mrb[0].mxu0 %v120
    %v192 = vpop.f32.mrb[0].mxu0
    %v193 = vadd.f32 0.0, %v192
    %v194 = vpop.f32.mrb[0].mxu0
    %v195 = vpop.f32.mrb[0].mxu0
    %v196 = vadd.f32 0.0, %v195
    %v197 = vpop.f32.mrb[0].mxu0
    %198 = vmatprep.mubr.bf16.mxu0 0
    %199 = vmatmul.mubr.bf16.gmra.mrb[0].mxu0 %v123
    %v200 = vpop.f32.mrb[0].mxu0
    %v201 = vadd.f32 0.0, %v200
    %v202 = vpop.f32.mrb[0].mxu0
    %v203 = vpop.f32.mrb[0].mxu0
    %v204 = vadd.f32 0.0, %v203
    %v205 = vpop.f32.mrb[0].mxu0
    %206 = vmatprep.mubr.bf16.mxu0 0
    %207 = vmatmul.mubr.bf16.gmra.mrb[0].mxu0 %v126
    %v208 = vpop.f32.mrb[0].mxu0
    %v209 = vadd.f32 0.0, %v208
    %v210 = vpop.f32.mrb[0].mxu0
    %v211 = vpop.f32.mrb[0].mxu0
    %v212 = vadd.f32 0.0, %v211
    %v213 = vpop.f32.mrb[0].mxu0
    %214 = vmatprep.mubr.bf16.mxu0 0
    %215 = vmatmul.mubr.bf16.gmra.mrb[0].mxu0 %v129
    %v216 = vpop.f32.mrb[0].mxu0
    %v217 = vadd.f32 0.0, %v216
    %v218 = vpop.f32.mrb[0].mxu0
    %v219 = vpop.f32.mrb[0].mxu0
    %v220 = vadd.f32 0.0, %v219
    %v221 = vpop.f32.mrb[0].mxu0
    %222 = vmatprep.mubr.bf16.mxu0 0
    %223 = vmatmul.mubr.bf16.gmra.mrb[0].mxu0 %v132
    %v224 = vpop.f32.mrb[0].mxu0
    %v225 = vadd.f32 0.0, %v224
    %v226 = vpop.f32.mrb[0].mxu0
    %v227 = vpop.f32.mrb[0].mxu0
    %v228 = vadd.f32 0.0, %v227
    %v229 = vpop.f32.mrb[0].mxu0
    %230 = vmatprep.mubr.bf16.mxu0 0
    %231 = vmatmul.mubr.bf16.gmra.mrb[0].mxu0 %v135
    %v232 = vpop.f32.mrb[0].mxu0
    %v233 = vadd.f32 0.0, %v232
    %v234 = vpop.f32.mrb[0].mxu0
    %v235 = vpop.f32.mrb[0].mxu0
    %v236 = vadd.f32 0.0, %v235
    %v237 = vpop.f32.mrb[0].mxu0
    %238 = vmatprep.mubr.bf16.mxu0 0
    %239 = vmatmul.mubr.bf16.gmra.mrb[0].mxu0 %v138
    %v240 = vpop.f32.mrb[0].mxu0
    %v241 = vadd.f32 0.0, %v240
    %v242 = vpop.f32.mrb[0].mxu0
    %v243 = vpop.f32.mrb[0].mxu0
    %v244 = vadd.f32 0.0, %v243
    %v245 = vpop.f32.mrb[0].mxu0
    %246 = vmatprep.mubr.bf16.mxu0 0
    %247 = vmatmul.mubr.bf16.gmra.mrb[0].mxu0 %v141
    %v248 = vpop.f32.mrb[0].mxu0
    %v249 = vadd.f32 0.0, %v248
    %v250 = vpop.f32.mrb[0].mxu0
    %v251 = vpop.f32.mrb[0].mxu0
    %v252 = vadd.f32 0.0, %v251
    %v253 = vpop.f32.mrb[0].mxu0
    %254 = vmatprep.mubr.bf16.mxu0 0
    %255 = vmatmul.mubr.bf16.gmra.mrb[0].mxu0 %v144
    %v256 = vpop.f32.mrb[0].mxu0
    %v257 = vadd.f32 0.0, %v256
    %v258 = vpop.f32.mrb[0].mxu0
    %v259 = vpop.f32.mrb[0].mxu0
    %v260 = vadd.f32 0.0, %v259
    %v261 = vpop.f32.mrb[0].mxu0
    %262 = vdwg.mxu0
    %v263 = vmax.f32 %v185, %v204
    %v264 = vmax.f32 %v188, %v209
    %v265 = vmax.f32 %v193, %v212
    %v266 = vmax.f32 %v196, %v217
    %v267 = vmax.f32 %v201, %v220
    %v268 = vmax.f32 %v225, %v244
    %v269 = vmax.f32 %v228, %v249
    %v270 = vmax.f32 %v233, %v252
    %v271 = vmax.f32 %v236, %v257
    %v272 = vmax.f32 %v241, %v260
    %v273 = vmax.f32 %v263, %v268
    %v274 = vmax.f32 %v264, %v269
    %v275 = vmax.f32 %v265, %v270
    %v276 = vmax.f32 %v266, %v271
    %v277 = vmax.f32 %v267, %v272
    %v278 = vld [vmem:[%s2] sm:$0xf]
    %v279 = vld [vmem:[%s2 + $0x4] sm:$0xf]
    %v280 = vld [vmem:[%s2 + $0x8] sm:$0xf]
    %v281 = vld [vmem:[%s2 + $0xc] sm:$0xf]
    %v282 = vld [vmem:[%s2 + $0x10] sm:$0xf]
    %v283 = vld [vmem:[%s2 + $0x14] sm:$0xf]
    %v284 = vld [vmem:[%s2 + $0x18] sm:$0xf]
    %v285 = vld [vmem:[%s2 + $0x1c] sm:$0xf]
    %v286 = vpack.c.bf16 %v274, %v273
    %v287 = vpack.c.bf16 %v276, %v275
    %v288 = vpack.c.bf16 %v277, %v277
    %v289 = vld [vmem:[%s3] sm:$0xff]
    %v290 = vld [vmem:[%s3 + $0x8] sm:$0xff]
    %v291 = vld [vmem:[%s3 + $0x10] sm:$0xff]
    %v292 = vld [vmem:[%s3 + $0x18] sm:$0xff]
    %v293 = vld [vmem:[%s3 + $0x20] sm:$0xff]
    %v294 = vld [vmem:[%s3 + $0x28] sm:$0xff]
    %v295 = vld [vmem:[%s3 + $0x30] sm:$0xff]
    %v296 = vld [vmem:[%s3 + $0x38] sm:$0xff]
    %298 = vset.pattern.permute.xlu0 0
    %299 = vperm.xlu0 %298, %v289
    %v300 = vpop.permute.xlu0 %299
    %303 = vset.pattern.permute.xlu0 0
    %304 = vperm.xlu0 %303, %v290
    %v305 = vpop.permute.xlu0 %304
    %308 = vset.pattern.permute.xlu0 0
    %309 = vperm.xlu0 %308, %v291
    %v310 = vpop.permute.xlu0 %309
    %313 = vset.pattern.permute.xlu0 0
    %314 = vperm.xlu0 %313, %v292
    %v315 = vpop.permute.xlu0 %314
    %318 = vset.pattern.permute.xlu0 0
    %319 = vperm.xlu0 %318, %v293
    %v320 = vpop.permute.xlu0 %319
    %323 = vset.pattern.permute.xlu0 0
    %324 = vperm.xlu0 %323, %v294
    %v325 = vpop.permute.xlu0 %324
    %328 = vset.pattern.permute.xlu0 0
    %329 = vperm.xlu0 %328, %v295
    %v330 = vpop.permute.xlu0 %329
    %333 = vset.pattern.permute.xlu0 0
    %334 = vperm.xlu0 %333, %v296
    %v335 = vpop.permute.xlu0 %334
    %v345 = vunpack.c.l.b16 %v278
    %v346 = vunpack.c.l.b16 %v279
    %v347 = vunpack.c.l.b16 %v280
    %v348 = vunpack.c.l.b16 %v281
    %v349 = vunpack.c.l.b16 %v282
    %v350 = vunpack.c.l.b16 %v283
    %v351 = vunpack.c.l.b16 %v284
    %v352 = vunpack.c.l.b16 %v285
    %v353 = vpack.c.b16 %v346, %v345
    %v354 = vpack.c.b16 %v348, %v347
    %v355 = vpack.c.b16 %v350, %v349
    %v356 = vpack.c.b16 %v352, %v351
    %v358 = vsel %vm115, %v353, 0
    %v361 = vsel %vm115, %v354, 0
    %v364 = vsel %vm115, %v355, 0
    %v367 = vsel %vm115, %v356, 0
    %v370 = vsel %vm146, %v288, 0
    %372 = vmatprep.subr.bf16.mxu0 0
    %373 = vmatpush1.bf16.msra.mxu0 %v286
    %374 = vmatprep.subr.bf16.mxu0 0
    %375 = vmatpush1.bf16.msra.mxu0 %v287
    %376 = vmatprep.subr.bf16.mxu0 0
    %377 = vmatpush1.bf16.msra.mxu0 %v370
    %378 = vmatprep.subr.bf16.mxu0 0
    %379 = vmatpush1.bf16.msra.mxu0 0
    %380 = vmatprep.subr.bf16.mxu0 0
    %381 = vmatpush1.bf16.msra.mxu0 0
    %382 = vmatprep.subr.bf16.mxu0 0
    %383 = vmatpush1.bf16.msra.mxu0 0
    %384 = vmatprep.subr.bf16.mxu0 0
    %385 = vmatpush1.bf16.msra.mxu0 0
    %386 = vmatprep.subr.bf16.mxu0 0
    %387 = vmatpush1.bf16.msra.mxu0 0
    %388 = vmatprep.subr.bf16.mxu0 0
    %389 = vmatpush1.bf16.msra.mxu0 0
    %390 = vmatprep.subr.bf16.mxu0 0
    %391 = vmatpush1.bf16.msra.mxu0 0
    %392 = vmatprep.subr.bf16.mxu0 0
    %393 = vmatpush1.bf16.msra.mxu0 0
    %394 = vmatprep.subr.bf16.mxu0 0
    %395 = vmatpush1.bf16.msra.mxu0 0
    %396 = vmatprep.subr.bf16.mxu0 0
    %397 = vmatpush1.bf16.msra.mxu0 0
    %398 = vmatprep.subr.bf16.mxu0 0
    %399 = vmatpush1.bf16.msra.mxu0 0
    %400 = vmatprep.subr.bf16.mxu0 0
    %401 = vmatpush1.bf16.msra.mxu0 0
    %402 = vmatprep.subr.bf16.mxu0 0
    %403 = vmatpush1.bf16.msra.mxu0 0
    %404 = vmatprep.mubr.bf16.mxu0 0
    %405 = vmatmul.mubr.bf16.gmra.mrb[0].mxu0 %v358
    %v406 = vpop.f32.mrb[0].mxu0
    %v407 = vadd.f32 %v300, %v406
    %v408 = vpop.f32.mrb[0].mxu0
    %v409 = vpop.f32.mrb[0].mxu0
    %v410 = vadd.f32 %v305, %v409
    %v411 = vpop.f32.mrb[0].mxu0
    %412 = vmatprep.mubr.bf16.mxu0 0
    %413 = vmatmul.mubr.bf16.gmra.mrb[0].mxu0 %v361
    %v414 = vpop.f32.mrb[0].mxu0
    %v415 = vadd.f32 %v310, %v414
    %v416 = vpop.f32.mrb[0].mxu0
    %v417 = vpop.f32.mrb[0].mxu0
    %v418 = vadd.f32 %v315, %v417
    %v419 = vpop.f32.mrb[0].mxu0
    %420 = vmatprep.mubr.bf16.mxu0 0
    %421 = vmatmul.mubr.bf16.gmra.mrb[0].mxu0 %v364
    %v422 = vpop.f32.mrb[0].mxu0
    %v423 = vadd.f32 %v320, %v422
    %v424 = vpop.f32.mrb[0].mxu0
    %v425 = vpop.f32.mrb[0].mxu0
    %v426 = vadd.f32 %v325, %v425
    %v427 = vpop.f32.mrb[0].mxu0
    %428 = vmatprep.mubr.bf16.mxu0 0
    %429 = vmatmul.mubr.bf16.gmra.mrb[0].mxu0 %v367
    %v430 = vpop.f32.mrb[0].mxu0
    %v431 = vadd.f32 %v330, %v430
    %v432 = vpop.f32.mrb[0].mxu0
    %v433 = vpop.f32.mrb[0].mxu0
    %v434 = vadd.f32 %v335, %v433
    %v435 = vpop.f32.mrb[0].mxu0
    %436 = vdwg.mxu0
    %v437 = vmax.f32 %v407, 0.0
    %v438 = vmax.f32 %v410, 0.0
    %v439 = vmax.f32 %v415, 0.0
    %v440 = vmax.f32 %v418, 0.0
    %v441 = vmax.f32 %v423, 0.0
    %v442 = vmax.f32 %v426, 0.0
    %v443 = vmax.f32 %v431, 0.0
    %v444 = vmax.f32 %v434, 0.0
    %v445 = vld [vmem:[%s4] sm:$0x3]
    %v446 = vpack.c.bf16 %v438, %v437
    %v447 = vpack.c.bf16 %v440, %v439
    %v448 = vpack.c.bf16 %v442, %v441
    %v449 = vpack.c.bf16 %v444, %v443
    %v450 = vld [vmem:[%s5] sm:$0xf]
    %452 = vset.pattern.permute.xlu0 0
    %453 = vperm.xlu0 %452, %v450
    %v454 = vpop.permute.xlu0 %453
    %vm456 = vcmask 523264
    %v458 = vsel %vm456, %v445, 0
    %460 = vmatprep.subr.bf16.mxu0 0
    %461 = vmatpush1.bf16.msra.mxu0 %v446
    %462 = vmatprep.subr.bf16.mxu0 0
    %463 = vmatpush1.bf16.msra.mxu0 %v447
    %464 = vmatprep.subr.bf16.mxu0 0
    %465 = vmatpush1.bf16.msra.mxu0 %v448
    %466 = vmatprep.subr.bf16.mxu0 0
    %467 = vmatpush1.bf16.msra.mxu0 %v449
    %468 = vmatprep.subr.bf16.mxu0 0
    %469 = vmatpush1.bf16.msra.mxu0 0
    %470 = vmatprep.subr.bf16.mxu0 0
    %471 = vmatpush1.bf16.msra.mxu0 0
    %472 = vmatprep.subr.bf16.mxu0 0
    %473 = vmatpush1.bf16.msra.mxu0 0
    %474 = vmatprep.subr.bf16.mxu0 0
    %475 = vmatpush1.bf16.msra.mxu0 0
    %476 = vmatprep.subr.bf16.mxu0 0
    %477 = vmatpush1.bf16.msra.mxu0 0
    %478 = vmatprep.subr.bf16.mxu0 0
    %479 = vmatpush1.bf16.msra.mxu0 0
    %480 = vmatprep.subr.bf16.mxu0 0
    %481 = vmatpush1.bf16.msra.mxu0 0
    %482 = vmatprep.subr.bf16.mxu0 0
    %483 = vmatpush1.bf16.msra.mxu0 0
    %484 = vmatprep.subr.bf16.mxu0 0
    %485 = vmatpush1.bf16.msra.mxu0 0
    %486 = vmatprep.subr.bf16.mxu0 0
    %487 = vmatpush1.bf16.msra.mxu0 0
    %488 = vmatprep.subr.bf16.mxu0 0
    %489 = vmatpush1.bf16.msra.mxu0 0
    %490 = vmatprep.subr.bf16.mxu0 0
    %491 = vmatpush1.bf16.msra.mxu0 0
    %492 = vmatprep.mubr.bf16.mxu0 0
    %493 = vmatmul.mubr.bf16.gmra.mrb[0].mxu0 %v458
    %v494 = vpop.f32.mrb[0].mxu0
    %v495 = vadd.f32 %v454, %v494
    %v496 = vpop.f32.mrb[0].mxu0
    %v497 = vpop.f32.mrb[0].mxu0
    %v498 = vpop.f32.mrb[0].mxu0
    %499 = vdwg.mxu0
    %v500 = vsel %vm146, %v495, -inf
    %v501 = vrot.slane %v500, 4
    %v502 = vmax.f32 %v500, %v501
    %v503 = vrot.slane %v502, 2
    %v504 = vmax.f32 %v502, %v503
    %v505 = vrot.slane %v504, 1
    %v506 = vmax.f32 %v504, %v505
    %v507 = vsub.f32 %v495, %v506
    %v508 = vmul.f32 %v507, 1.442695
    %v509 = vpow.pop %v508
    %v510 = vsel %vm146, %v509, 0.0
    %v511 = vrot.slane %v510, 4
    %v512 = vadd.f32 %v510, %v511
    %v513 = vrot.slane %v512, 2
    %v514 = vadd.f32 %v512, %v513
    %v515 = vrot.slane %v514, 1
    %v516 = vadd.f32 %v514, %v515
    %v517 = vrcp.pop %v516
    %v518 = vmul.f32 %v516, %v517
    %v519 = vsub.f32 2.0, %v518
    %v520 = vmul.f32 %v517, %v519
    %v521 = vmul.f32 %v509, %v520
    %522 = vst [vmem:[#allocation2] sm:$0xf] %v521
    // Predicated region
    $region26: #{tpu_custom_call.1} parent=1 // pred_check
      _
    $region27: #{tpu_custom_call.1} parent=1 // pred_check_branch
      %524 = sbr.rel (0) target = $region29
    $region28: #{tpu_custom_call.1} parent=1 // pred_region
      %s526 = ssub.s32 64, 64
      %527 = vsyncadd [#allocation3], %s526
      %s529 = sshll.u32 [#allocation2], 4
      %s530 = int_to_ptr.vmem [resolvable:$true] %s529
      %532 = dma.vmem_to_hbm [thread:$0]  %s530, 64, %s6, [#allocation3]
    $region29: #{tpu_custom_call.1} parent=1 // pred_fallthru
      _
    // Predicated region
    $region30: #{tpu_custom_call.1} parent=1 // pred_check
      _
    $region31: #{tpu_custom_call.1} parent=1 // pred_check_branch
      %534 = sbr.rel (0) target = $region33
    $region32: #{tpu_custom_call.1} parent=1 // pred_region
      %535 = dma.done [#allocation3], 64
    $region33: #{tpu_custom_call.1} parent=1 // pred_fallthru
      _
    %536 = vsyncpa [#allocation3], 1

</llo_original>
